<compile_context>
chip_gen: v6e
topology: v6e:2x2x1
jax: 0.10.0
libtpu: 0.0.40
codegen_flags: <defaults>
</compile_context>

<pallas_src>
import functools

import jax
import jax.numpy as jnp
from jax.experimental import pallas as pl
from jax.experimental.pallas import tpu as pltpu

_LANE = 128
_MAX_TILE_LANES = 8192  # measured pipeline efficiency plateaus well before this


def _layernorm2d_kernel(x_ref, w_ref, b_ref, o_ref, *, eps, bf16_tail):
    # x_ref/o_ref: (Nb, C, T)   w_ref/b_ref: (1, C, 1)
    xf = x_ref[...].astype(jnp.float32)
    u = jnp.mean(xf, axis=1, keepdims=True)             # mean over channels (f32)
    xc = xf - u
    var = jnp.mean(xc * xc, axis=1, keepdims=True)      # biased variance (f32)
    inv = jax.lax.rsqrt(var + eps)                      # EUP, off the VALU slot
    # Note: on v7x the two channel sums could additionally be pushed onto the
    # idle MXU (ones @ x with f32 accumulation); kept on the VPU/XLU here for
    # lowering portability — the kernel sits on the HBM roofline on v5e/v6e and
    # is only marginally VALU-bound on v7x.
    if bf16_tail:
        # v6e/v7x with bf16 input: per-element tail in bf16 (packed VALU lanes,
        # half the vreg traffic); only the (Nb,1,T) statistics stay in f32.
        dt = o_ref.dtype
        y = xc.astype(dt) * inv.astype(dt)
        o_ref[...] = w_ref[...].astype(dt) * y + b_ref[...].astype(dt)
    else:
        # f32 inputs, or chips without a bf16 VALU (v5e and older): f32 tail.
        y = xc * inv
        y = w_ref[...].astype(jnp.float32) * y + b_ref[...].astype(jnp.float32)
        o_ref[...] = y.astype(o_ref.dtype)


def _divisors(n):
    return [d for d in range(1, n + 1) if n % d == 0]


def _chip_flags():
    """(is_v7x, has_bf16_valu) from the local device kind; conservative default."""
    kind = ""
    try:
        kind = jax.devices()[0].device_kind.lower()
    except Exception:
        pass
    is_v7x = ("v7" in kind) or ("7x" in kind)
    has_bf16_valu = is_v7x or ("v6" in kind)
    return is_v7x, has_bf16_valu


def _vmem_budgets(is_v7x):
    """(working-set budget for pipelined buffers + temporaries, scoped vmem limit)."""
    try:
        cap = int(pltpu.get_tpu_info().vmem_capacity_bytes)
    except Exception:
        cap = (64 << 20) if is_v7x else (128 << 20)
    if is_v7x:
        # Per-TensorCore VMEM is 64 MiB on v7x; the query may report chip level,
        # so clamp and keep generous headroom for the f32 temporaries.
        cap = min(cap, 64 << 20)
        return 18 << 20, 48 << 20
    working = min(cap // 4, 32 << 20)
    limit = min(max(cap // 2, 32 << 20), 64 << 20)
    return working, limit


def _tile_bytes(nb, C, t, itemsize):
    # 2 input + 2 output double buffers (itemsize each) plus ~2 f32 in-kernel
    # temporaries (the f32 upcast of x and the centered copy) per tile element.
    return nb * C * t * (4 * itemsize + 2 * 4)


def _choose_tiles(N, C, HW, itemsize, working_budget, is_v7x):
    """Pick (Nb, T): batch-block rows and spatial (lane) tile."""
    def fits(nb, t):
        return _tile_bytes(nb, C, t, itemsize) <= working_budget

    if HW <= _LANE:
        T = HW                                   # block == full (tiny) spatial dim
    else:
        per_lane = C * (4 * itemsize + 8)        # bytes per lane of the working set
        t_fit = (working_budget // per_lane) // _LANE * _LANE
        t_cap = min(_MAX_TILE_LANES, (HW // _LANE) * _LANE)
        T = max(_LANE, min(t_cap, t_fit))        # lane-dense (multiple of 128)
    n_spatial = pl.cdiv(HW, T)

    # Block batch rows so each grid step moves >= ~1 MiB (rows are independent).
    target_step_bytes = 1 << 20
    nb_cands = [d for d in _divisors(N) if fits(d, T)] or [1]
    if is_v7x and n_spatial == 1 and N >= 2:
        # Keep >= 2 grid programs so both v7x TensorCores get lane-dense work;
        # prefer splitting the batch block over shrinking the spatial tile.
        nb_cands = [d for d in nb_cands if d <= N // 2] or [1]
    reaching = [d for d in nb_cands if d * C * T * itemsize >= target_step_bytes]
    Nb = min(reaching) if reaching else max(nb_cands)

    # Only when the batch axis cannot be split (N == 1): halve the spatial tile
    # once for the second v7x TensorCore, never below 512 lanes.
    if is_v7x and N == 1 and pl.cdiv(HW, T) == 1 and T >= 1024:
        T = (T // 2) // _LANE * _LANE
    return Nb, T


def layernorm2d(x, weight, bias, eps=1e-6):
    """x: (N, C, H, W); weight/bias: (C,). Normalizes over the channel dim."""
    N, C, H, W = x.shape
    HW = H * W
    # Lane axis = flattened spatial dim. No HBM-side padding: the partial last
    # spatial block (if HW % T != 0) is padded on read / masked on store.
    xf = x.reshape(N, C, HW)
    w = weight.reshape(1, C, 1)
    b = bias.reshape(1, C, 1)

    is_v7x, has_bf16_valu = _chip_flags()
    working_budget, vmem_limit = _vmem_budgets(is_v7x)
    itemsize = xf.dtype.itemsize
    Nb, T = _choose_tiles(N, C, HW, itemsize, working_budget, is_v7x)
    grid = (pl.cdiv(N, Nb), pl.cdiv(HW, T))

    bf16_tail = bool(has_bf16_valu and xf.dtype == jnp.bfloat16)

    cost = pl.CostEstimate(
        flops=7 * N * C * HW,
        transcendentals=N * HW,
        bytes_accessed=2 * N * C * HW * itemsize + 2 * C * weight.dtype.itemsize,
    )

    def x_index_map(n, t):
        return (n, 0, t)

    def run(x_spec):
        return pl.pallas_call(
            functools.partial(_layernorm2d_kernel, eps=eps, bf16_tail=bf16_tail),
            out_shape=jax.ShapeDtypeStruct((N, C, HW), x.dtype),
            grid_spec=pltpu.PrefetchScalarGridSpec(
                num_scalar_prefetch=0,
                grid=grid,
                in_specs=[
                    x_spec,
                    pl.BlockSpec((1, C, 1), lambda n, t: (0, 0, 0)),
                    pl.BlockSpec((1, C, 1), lambda n, t: (0, 0, 0)),
                ],
                out_specs=pl.BlockSpec((Nb, C, T), x_index_map),
            ),
            compiler_params=pltpu.CompilerParams(
                dimension_semantics=("parallel", "parallel"),
                vmem_limit_bytes=int(vmem_limit),
            ),
            cost_estimate=cost,
        )(xf, w, b)

    # Small per-step blocks: deepen input pipelining to 3 buffers to hide DMA
    # latency behind the per-step overhead; fall back to default double
    # buffering if this Pallas build rejects pipeline_mode / Buffered.
    deep_in = Nb * C * T * itemsize <= (1 << 19)
    out = None
    if deep_in:
        try:
            out = run(pl.BlockSpec((Nb, C, T), x_index_map,
                                   pipeline_mode=pl.Buffered(3)))
        except Exception:
            out = None
    if out is None:
        out = run(pl.BlockSpec((Nb, C, T), x_index_map))

    return out.reshape(N, C, H, W)


def _reference(x, weight, bias, eps=1e-6):
    u = jnp.mean(x, axis=1, keepdims=True)
    s = jnp.mean((x - u) ** 2, axis=1, keepdims=True)
    xn = (x - u) / jnp.sqrt(s + eps)
    return weight[None, :, None, None] * xn + bias[None, :, None, None]


if __name__ == "__main__":
    # Test 1: f32, tiny C (matches the module's small example shapes).
    key = jax.random.PRNGKey(0)
    N, C, H, W = 2, 4, 16, 16
    x = jax.random.normal(key, (N, C, H, W), dtype=jnp.float32)
    kw, kb = jax.random.split(jax.random.PRNGKey(1))
    weight = jnp.ones((C,), jnp.float32) + 0.1 * jax.random.normal(kw, (C,), jnp.float32)
    bias = jnp.zeros((C,), jnp.float32) + 0.1 * jax.random.normal(kb, (C,), jnp.float32)

    y = layernorm2d(x, weight, bias)
    jax.block_until_ready(y)
    y_ref = _reference(x, weight, bias)
    assert y.shape == (N, C, H, W)
    assert jnp.allclose(y, y_ref, atol=1e-5, rtol=1e-5), "f32 mismatch vs reference"

    # Test 2: bf16 input, realistic C, HW not a multiple of 128 (exercises the
    # no-pad partial-lane path and the bf16 tail on v6e/v7x).
    N2, C2, H2, W2 = 2, 64, 8, 8
    x2 = jax.random.normal(jax.random.PRNGKey(2), (N2, C2, H2, W2)).astype(jnp.bfloat16)
    w2 = (jnp.ones((C2,)) + 0.1 * jax.random.normal(jax.random.PRNGKey(3), (C2,))
          ).astype(jnp.bfloat16)
    b2 = (0.1 * jax.random.normal(jax.random.PRNGKey(4), (C2,))).astype(jnp.bfloat16)
    y2 = layernorm2d(x2, w2, b2)
    jax.block_until_ready(y2)
    y2_ref = _reference(x2.astype(jnp.float32), w2.astype(jnp.float32),
                        b2.astype(jnp.float32))
    assert y2.shape == (N2, C2, H2, W2)
    assert jnp.allclose(y2.astype(jnp.float32), y2_ref, atol=5e-2, rtol=5e-2), \
        "bf16 mismatch vs reference"

    print("KERNEL_OK")
</pallas_src>

<mosaic_0001>
module attributes {stable_mosaic.version = 11 : i64} {
  func.func @_layernorm2d_kernel(%arg0: i32, %arg1: i32, %arg2: memref<2x4x256xf32, #tpu.memory_space<vmem>>, %arg3: memref<1x4x1xf32, #tpu.memory_space<vmem>>, %arg4: memref<1x4x1xf32, #tpu.memory_space<vmem>>, %arg5: memref<2x4x256xf32, #tpu.memory_space<vmem>>) attributes {dimension_semantics = [#tpu.dimension_semantics<parallel>, #tpu.dimension_semantics<parallel>], iteration_bounds = array<i64: 1, 1>, scalar_prefetch = 0 : i64, scratch_operands = 0 : i64, tpu.core_type = #tpu.core_type<tc>, window_params = [{transform_indices = @transform_0, window_bounds = array<i64: 2, 4, 256>}, {pipeline_mode = #tpu.pipeline_mode<synchronous>, transform_indices = @transform_1, window_bounds = array<i64: 1, 4, 1>}, {pipeline_mode = #tpu.pipeline_mode<synchronous>, transform_indices = @transform_2, window_bounds = array<i64: 1, 4, 1>}, {transform_indices = @transform_3, window_bounds = array<i64: 2, 4, 256>}]} {
    %c0 = arith.constant 0 : index
    %c0_0 = arith.constant 0 : index
    %c0_1 = arith.constant 0 : index
    %0 = vector.load %arg2[%c0, %c0_0, %c0_1] : memref<2x4x256xf32, #tpu.memory_space<vmem>>, vector<2x4x256xf32>
    %cst = arith.constant dense<0.000000e+00> : vector<2x256xf32>
    %1 = vector.multi_reduction <add>, %0, %cst [1] : vector<2x4x256xf32> to vector<2x256xf32>
    %2 = vector.shape_cast %1 : vector<2x256xf32> to vector<2x1x256xf32>
    %cst_2 = arith.constant 4.000000e+00 : f32
    %3 = vector.broadcast %cst_2 : f32 to vector<2x1x256xf32>
    %4 = arith.divf %2, %3 : vector<2x1x256xf32>
    %5 = vector.broadcast %4 : vector<2x1x256xf32> to vector<2x4x256xf32>
    %6 = arith.subf %0, %5 : vector<2x4x256xf32>
    %7 = arith.mulf %6, %6 : vector<2x4x256xf32>
    %cst_3 = arith.constant dense<0.000000e+00> : vector<2x256xf32>
    %8 = vector.multi_reduction <add>, %7, %cst_3 [1] : vector<2x4x256xf32> to vector<2x256xf32>
    %9 = vector.shape_cast %8 : vector<2x256xf32> to vector<2x1x256xf32>
    %cst_4 = arith.constant 4.000000e+00 : f32
    %10 = vector.broadcast %cst_4 : f32 to vector<2x1x256xf32>
    %11 = arith.divf %9, %10 : vector<2x1x256xf32>
    %cst_5 = arith.constant 9.99999997E-7 : f32
    %12 = vector.broadcast %cst_5 : f32 to vector<2x1x256xf32>
    %13 = arith.addf %11, %12 : vector<2x1x256xf32>
    %14 = math.rsqrt %13 : vector<2x1x256xf32>
    %15 = vector.broadcast %14 : vector<2x1x256xf32> to vector<2x4x256xf32>
    %16 = arith.mulf %6, %15 : vector<2x4x256xf32>
    %c0_6 = arith.constant 0 : index
    %c0_7 = arith.constant 0 : index
    %c0_8 = arith.constant 0 : index
    %17 = vector.load %arg3[%c0_6, %c0_7, %c0_8] : memref<1x4x1xf32, #tpu.memory_space<vmem>>, vector<1x4x1xf32>
    %18 = vector.broadcast %17 : vector<1x4x1xf32> to vector<2x4x256xf32>
    %19 = arith.mulf %18, %16 : vector<2x4x256xf32>
    %c0_9 = arith.constant 0 : index
    %c0_10 = arith.constant 0 : index
    %c0_11 = arith.constant 0 : index
    %20 = vector.load %arg4[%c0_9, %c0_10, %c0_11] : memref<1x4x1xf32, #tpu.memory_space<vmem>>, vector<1x4x1xf32>
    %21 = vector.broadcast %20 : vector<1x4x1xf32> to vector<2x4x256xf32>
    %22 = arith.addf %19, %21 : vector<2x4x256xf32>
    %c0_12 = arith.constant 0 : index
    %c0_13 = arith.constant 0 : index
    %c0_14 = arith.constant 0 : index
    %23 = vector.load %arg5[%c0_12, %c0_13, %c0_14] : memref<2x4x256xf32, #tpu.memory_space<vmem>>, vector<2x4x256xf32>
    tpu.vector_store %arg5[%c0_12, %c0_13, %c0_14], %22 {strides = array<i32>} : memref<2x4x256xf32, #tpu.memory_space<vmem>>, vector<2x4x256xf32>,
    return
  }
  func.func @transform_0(%arg0: i32, %arg1: i32) -> (i32, i32, i32) {
    %c0_i32 = arith.constant 0 : i32
    %c0_i32_0 = arith.constant 0 : i32
    return %arg0, %c0_i32, %arg1 : i32, i32, i32
  }
  func.func @transform_1(%arg0: i32, %arg1: i32) -> (i32, i32, i32) {
    %c0_i32 = arith.constant 0 : i32
    %c0_i32_0 = arith.constant 0 : i32
    %c0_i32_1 = arith.constant 0 : i32
    %c0_i32_2 = arith.constant 0 : i32
    return %c0_i32, %c0_i32_0, %c0_i32_1 : i32, i32, i32
  }
  func.func @transform_2(%arg0: i32, %arg1: i32) -> (i32, i32, i32) {
    %c0_i32 = arith.constant 0 : i32
    %c0_i32_0 = arith.constant 0 : i32
    %c0_i32_1 = arith.constant 0 : i32
    %c0_i32_2 = arith.constant 0 : i32
    return %c0_i32, %c0_i32_0, %c0_i32_1 : i32, i32, i32
  }
  func.func @transform_3(%arg0: i32, %arg1: i32) -> (i32, i32, i32) {
    %c0_i32 = arith.constant 0 : i32
    %c0_i32_0 = arith.constant 0 : i32
    return %arg0, %c0_i32, %arg1 : i32, i32, i32
  }
}

</mosaic_0001>

<llo_original>
// kernel: tpu_custom_call.1
$region0: #{tpu_custom_call.1}
  #allocation0 [shape = 'u32[]', space=smem, size = 0x4, offset = 0x4, fixed_abs, tag = 'smem constant byte address 0x4 - core index']
  #allocation1 [shape = 'u32[144,128]{1,0:T(1,128)}', space=vmem, size = 0x12000, scoped, tag = 'internal scratch']
  %s0 = inlined_call_operand.hbm [shape: f32[2,4,256], index: 0, kind: input, shape index: {}]
  %s1 = inlined_call_operand.vmem [shape: f32[1,4,1], index: 1, kind: input, shape index: {}]
  %s2 = inlined_call_operand.vmem [shape: f32[1,4,1], index: 2, kind: input, shape index: {}]
  %s3 = inlined_call_operand.hbm [shape: f32[2,4,256], index: 3, kind: output, shape index: {}]
  %s4 = sld [smem:[#allocation0]]
  $region26: #{tpu_custom_call.1} parent=0
    _
  %s6 = ssub.s32 1, %s4
  %s7 = scalar_select 0, %s6, %s4
  $region1: #{tpu_custom_call.1} parent=0
    #allocation2 [shape = 'u8[8192]{0}', space=vmem, size = 0x2000, scoped, tag = 'input window, operand 0, single buffered']
    #allocation3 [shape = 's32[1]{0}', space=sflag, size = 0x4, scoped, tag = 'scoped memory for tpu_custom_call.1']
    #allocation4 [shape = 's32[1]{0}', space=sflag, size = 0x4, scoped, tag = 'scoped memory for tpu_custom_call.1']
    #allocation5 [shape = 'u8[8192]{0}', space=vmem, size = 0x2000, scoped, tag = 'output window, operand 0, single buffered']
    %8 = vsyncpa [#allocation3], 0
    %9 = vsyncpa [#allocation4], 0
    // Predicated region
    $region2: #{tpu_custom_call.1} parent=1 // pred_check
      _
    $region3: #{tpu_custom_call.1} parent=1 // pred_check_branch
      %11 = sbr.rel (0) target = $region5
    $region4: #{tpu_custom_call.1} parent=1 // pred_region
      %s13 = ssub.s32 256, 256
      %14 = vsyncadd [#allocation3], %s13
      %s15 = sshll.u32 [#allocation2], 4
      %s16 = int_to_ptr.vmem [resolvable:$true] %s15
      %21 = dma.hbm_to_vmem [thread:$0]  %s0, 256, %s16, [#allocation3], 128, 128, 8
    $region5: #{tpu_custom_call.1} parent=1 // pred_fallthru
      _
    // Predicated region
    $region6: #{tpu_custom_call.1} parent=1 // pred_check
      _
    $region7: #{tpu_custom_call.1} parent=1 // pred_check_branch
      %23 = sbr.rel (0) target = $region9
    $region8: #{tpu_custom_call.1} parent=1 // pred_region
      _
    $region9: #{tpu_custom_call.1} parent=1 // pred_fallthru
      _
    // Predicated region
    $region10: #{tpu_custom_call.1} parent=1 // pred_check
      _
    $region11: #{tpu_custom_call.1} parent=1 // pred_check_branch
      %25 = sbr.rel (0) target = $region13
    $region12: #{tpu_custom_call.1} parent=1 // pred_region
      _
    $region13: #{tpu_custom_call.1} parent=1 // pred_fallthru
      _
    // Predicated region
    $region14: #{tpu_custom_call.1} parent=1 // pred_check
      _
    $region15: #{tpu_custom_call.1} parent=1 // pred_check_branch
      %27 = sbr.rel (0) target = $region17
    $region16: #{tpu_custom_call.1} parent=1 // pred_region
      %28 = dma.done [#allocation3], 256
    $region17: #{tpu_custom_call.1} parent=1 // pred_fallthru
      _
    %v29 = vld [vmem:[#allocation2] sm:$0xff]
    %v30 = vld [vmem:[#allocation2 + $0x8] sm:$0xff]
    %v33 = vcombine.high %v29, %v29
    %v34 = vcombine.high %v30, %v30
    %vm37 = vcmask 1043456
    %v38 = vsel %vm37, %v29, 0.0
    %v39 = vrot.slane %v38, 4
    %v40 = vadd.f32 %v38, %v39
    %v41 = vrot.slane %v40, 2
    %v42 = vadd.f32 %v40, %v41
    %v43 = vrot.slane %v42, 1
    %v44 = vadd.f32 %v42, %v43
    %v45 = vsel %vm37, %v33, 0.0
    %v46 = vrot.slane %v45, 4
    %v47 = vadd.f32 %v45, %v46
    %v48 = vrot.slane %v47, 2
    %v49 = vadd.f32 %v47, %v48
    %v50 = vrot.slane %v49, 1
    %v51 = vadd.f32 %v49, %v50
    %v52 = vsel %vm37, %v30, 0.0
    %v53 = vrot.slane %v52, 4
    %v54 = vadd.f32 %v52, %v53
    %v55 = vrot.slane %v54, 2
    %v56 = vadd.f32 %v54, %v55
    %v57 = vrot.slane %v56, 1
    %v58 = vadd.f32 %v56, %v57
    %v59 = vsel %vm37, %v34, 0.0
    %v60 = vrot.slane %v59, 4
    %v61 = vadd.f32 %v59, %v60
    %v62 = vrot.slane %v61, 2
    %v63 = vadd.f32 %v61, %v62
    %v64 = vrot.slane %v63, 1
    %v65 = vadd.f32 %v63, %v64
    %v66 = vrcp.pop 4.0
    %v67 = vmul.f32 %v44, %v66
    %v68 = vmul.f32 %v51, %v66
    %v69 = vmul.f32 %v58, %v66
    %v70 = vmul.f32 %v65, %v66
    %v75 = vcombine.low %v67, %v68
    %v76 = vcombine.low %v69, %v70
    %v79 = vsub.f32 %v29, %v75
    %v80 = vsub.f32 %v30, %v76
    %v81 = vmul.f32 %v79, %v79
    %v82 = vmul.f32 %v80, %v80
    %v85 = vcombine.high %v81, %v81
    %v86 = vcombine.high %v82, %v82
    %v89 = vsel %vm37, %v81, 0.0
    %v90 = vrot.slane %v89, 4
    %v91 = vadd.f32 %v89, %v90
    %v92 = vrot.slane %v91, 2
    %v93 = vadd.f32 %v91, %v92
    %v94 = vrot.slane %v93, 1
    %v95 = vadd.f32 %v93, %v94
    %v96 = vsel %vm37, %v85, 0.0
    %v97 = vrot.slane %v96, 4
    %v98 = vadd.f32 %v96, %v97
    %v99 = vrot.slane %v98, 2
    %v100 = vadd.f32 %v98, %v99
    %v101 = vrot.slane %v100, 1
    %v102 = vadd.f32 %v100, %v101
    %v103 = vsel %vm37, %v82, 0.0
    %v104 = vrot.slane %v103, 4
    %v105 = vadd.f32 %v103, %v104
    %v106 = vrot.slane %v105, 2
    %v107 = vadd.f32 %v105, %v106
    %v108 = vrot.slane %v107, 1
    %v109 = vadd.f32 %v107, %v108
    %v110 = vsel %vm37, %v86, 0.0
    %v111 = vrot.slane %v110, 4
    %v112 = vadd.f32 %v110, %v111
    %v113 = vrot.slane %v112, 2
    %v114 = vadd.f32 %v112, %v113
    %v115 = vrot.slane %v114, 1
    %v116 = vadd.f32 %v114, %v115
    %v117 = vmul.f32 %v95, %v66
    %v118 = vmul.f32 %v102, %v66
    %v119 = vmul.f32 %v109, %v66
    %v120 = vmul.f32 %v116, %v66
    %v121 = vadd.f32 %v117, 1e-06
    %v122 = vadd.f32 %v118, 1e-06
    %v123 = vadd.f32 %v119, 1e-06
    %v124 = vadd.f32 %v120, 1e-06
    %v125 = vrsqrt.pop %v121
    %v126 = vrsqrt.pop %v122
    %v127 = vrsqrt.pop %v123
    %v128 = vrsqrt.pop %v124
    %v133 = vcombine.low %v125, %v126
    %v134 = vcombine.low %v127, %v128
    %v137 = vmul.f32 %v79, %v133
    %v138 = vmul.f32 %v80, %v134
    %v139 = vld [vmem:[%s1] sm:$0xf]
    %141 = vset.pattern.permute.xlu0 0
    %142 = vperm.xlu0 %141, %v139
    %v143 = vpop.permute.xlu0 %142
    %v147 = vcombine.high %v137, %v137
    %v148 = vcombine.high %v138, %v138
    %v151 = vmul.f32 %v143, %v137
    %v152 = vmul.f32 %v143, %v147
    %v153 = vmul.f32 %v143, %v138
    %v154 = vmul.f32 %v143, %v148
    %v155 = vld [vmem:[%s2] sm:$0xf]
    %157 = vset.pattern.permute.xlu0 0
    %158 = vperm.xlu0 %157, %v155
    %v159 = vpop.permute.xlu0 %158
    %v161 = vadd.f32 %v151, %v159
    %v162 = vadd.f32 %v152, %v159
    %v163 = vadd.f32 %v153, %v159
    %v164 = vadd.f32 %v154, %v159
    %v169 = vcombine.low %v161, %v162
    %v170 = vcombine.low %v163, %v164
    %173 = vst [vmem:[#allocation5] sm:$0xff] %v169
    %174 = vst [vmem:[#allocation5 + $0x8] sm:$0xff] %v170
    // Predicated region
    $region18: #{tpu_custom_call.1} parent=1 // pred_check
      _
    $region19: #{tpu_custom_call.1} parent=1 // pred_check_branch
      %176 = sbr.rel (0) target = $region21
    $region20: #{tpu_custom_call.1} parent=1 // pred_region
      %s178 = ssub.s32 256, 256
      %179 = vsyncadd [#allocation4], %s178
      %s180 = sshll.u32 [#allocation5], 4
      %s181 = int_to_ptr.vmem [resolvable:$true] %s180
      %186 = dma.vmem_to_hbm [thread:$0]  %s181, 256, %s3, [#allocation4], 128, 128, 8
    $region21: #{tpu_custom_call.1} parent=1 // pred_fallthru
      _
    // Predicated region
    $region22: #{tpu_custom_call.1} parent=1 // pred_check
      _
    $region23: #{tpu_custom_call.1} parent=1 // pred_check_branch
      %188 = sbr.rel (0) target = $region25
    $region24: #{tpu_custom_call.1} parent=1 // pred_region
      %189 = dma.done [#allocation4], 256
    $region25: #{tpu_custom_call.1} parent=1 // pred_fallthru
      _
    %190 = vsyncpa [#allocation3], 1
    %191 = vsyncpa [#allocation4], 1

</llo_original>
